<compile_context>
chip_gen: v5e
topology: v5e:2x2
jax: 0.10.0
libtpu: 0.0.40
codegen_flags: <defaults>
</compile_context>

<pallas_src>
import functools
import math

import jax
import jax.numpy as jnp
from jax import lax
from jax.experimental import pallas as pl
from jax.experimental.pallas import tpu as pltpu

OT_REG = 0.1        # self.ot_reg
OT_TAU = 0.5        # self.ot_tau
NUM_ITERS = 1000    # POT sinkhorn_knopp_unbalanced numItermax default
_TINY = 1e-30       # guards: C.max() == 0 and Kv / K^T u underflow


def _ot_uot_kernel(x_ref, y_ref, flow_t_ref, dist_ref, *, reg, reg_m, num_iters):
    # x_ref: (N, D) f32   y_ref: (M, D) f32
    # flow_t_ref: (M, N) f32 (plan, already transposed)   dist_ref: (1, 1) f32
    x = x_ref[...]
    y = y_ref[...]
    n, d = x.shape
    m = y.shape[0]

    # normalize_feature: subtract per-row min (lane-axis reduce, keepdims).
    x = x - jnp.min(x, axis=-1, keepdims=True)
    y = y - jnp.min(y, axis=-1, keepdims=True)

    # Squared-euclidean cost via the MXU expansion ||x||^2 + ||y||^2 - 2 x.y^T.
    # Both orientations (N,M) and (M,N) are built directly so no full-matrix
    # transpose is ever needed inside the kernel.
    cd = (((1,), (1,)), ((), ()))                       # contract the D axis
    ones_d = jnp.ones((1, d), jnp.float32)
    xy = lax.dot_general(x, y, cd, preferred_element_type=jnp.float32)        # (N, M)
    yx = lax.dot_general(y, x, cd, preferred_element_type=jnp.float32)        # (M, N)
    x_sq_col = jnp.sum(x * x, axis=-1, keepdims=True)                         # (N, 1)
    y_sq_col = jnp.sum(y * y, axis=-1, keepdims=True)                         # (M, 1)
    x_sq_row = lax.dot_general(ones_d, x * x, cd,
                               preferred_element_type=jnp.float32)            # (1, N)
    y_sq_row = lax.dot_general(ones_d, y * y, cd,
                               preferred_element_type=jnp.float32)            # (1, M)
    cost = jnp.maximum(x_sq_col + y_sq_row - 2.0 * xy, 0.0)                   # (N, M)
    cost_t = jnp.maximum(y_sq_col + x_sq_row - 2.0 * yx, 0.0)                 # (M, N)

    # K = exp(-(C / C.max()) / reg) with the normalization folded into one scalar
    # scale (single multiply, no (N,M) divide).  Guard C.max() == 0.
    cmax = jnp.max(jnp.max(cost, axis=1, keepdims=True), axis=0, keepdims=True)
    neg_scale = (-1.0 / reg) / jnp.maximum(cmax, _TINY)                       # (1, 1)
    k_mat = jnp.exp(cost * neg_scale)                                         # (N, M)
    k_t = jnp.exp(cost_t * neg_scale)                                         # (M, N) == K^T

    # Unbalanced Sinkhorn-Knopp (POT), uniform marginals a = 1/N, b = 1/M.
    # u, v are lane-dense rows; Kv / K^T u are MXU matvecs; the (a/Kv)**fi update
    # constants are folded into fi_log_a / fi_log_b (no per-iteration divides).
    fi = reg_m / (reg_m + reg)
    fi_log_a = fi * math.log(1.0 / n)
    fi_log_b = fi * math.log(1.0 / m)
    u0 = jnp.full((1, n), 1.0 / n, jnp.float32)
    v0 = jnp.full((1, m), 1.0 / m, jnp.float32)
    mv = (((1,), (0,)), ((), ()))                        # row-vector @ matrix

    def one_update(u, v):
        kv = lax.dot_general(v, k_t, mv, preferred_element_type=jnp.float32)    # (1, N)
        u = jnp.exp(fi_log_a - fi * jnp.log(jnp.maximum(kv, _TINY)))
        ktu = lax.dot_general(u, k_mat, mv, preferred_element_type=jnp.float32)  # (1, M)
        v = jnp.exp(fi_log_b - fi * jnp.log(jnp.maximum(ktu, _TINY)))
        return u, v

    # Two full updates per trip (manual unroll) -> longer LLO scheduling window.
    def body(_, uv):
        u, v = one_update(*uv)
        return one_update(u, v)

    u, v = lax.fori_loop(0, num_iters // 2, body, (u0, v0))
    if num_iters % 2:
        u, v = one_update(u, v)
    # TODO(synk): POT early-exits on stopThr=1e-6 with a NaN rollback; a while_loop
    # convergence check every ~64 iterations would match it more closely.

    # flow^T[j, i] = v[j] * K[i, j] * u[i], emitted already transposed so the
    # wrapper needs no extra XLA transpose.  Row-scaling by v uses a diag(v) MXU
    # matmul (avoids relayouting the lane-dense v row into a column).
    rows = lax.broadcasted_iota(jnp.int32, (m, m), 0)
    cols = lax.broadcasted_iota(jnp.int32, (m, m), 1)
    diag_v = jnp.where(rows == cols, v, 0.0).astype(jnp.float32)              # (M, M)
    flow_t = lax.dot_general(diag_v, k_t * u, mv,
                             preferred_element_type=jnp.float32)              # (M, N)
    flow_t_ref[...] = flow_t.astype(flow_t_ref.dtype)

    # dist = sum(C * flow) = sum(C^T * flow^T)
    dist = jnp.sum(jnp.sum(cost_t * flow_t, axis=1, keepdims=True),
                   axis=0, keepdims=True)                                     # (1, 1)
    dist_ref[...] = dist.astype(dist_ref.dtype)


def ot_attn_assem(x, y, *, ot_reg=OT_REG, ot_tau=OT_TAU, num_iters=NUM_ITERS):
    """x: (N, 1, D), y: (M, 1, D). Returns (pi^T of shape (1, 1, M, N), dist scalar)."""
    n, d = x.shape[0], x.shape[-1]
    m = y.shape[0]
    x2 = x.reshape(n, d).astype(jnp.float32)
    y2 = y.reshape(m, d).astype(jnp.float32)

    # Generation-aware VMEM budget: inputs + ~8 live (N,M)/(M,N) f32 matrices
    # + the (M,M) diag temp.  Cap at 85% of this chip's VMEM (128 MiB v5e/v6e,
    # 64 MiB per TensorCore on v7x).
    est = 4 * (2 * (n * d + m * d) + 8 * n * m + m * m) + (4 << 20)
    try:
        cap = int(pltpu.get_tpu_info().vmem_capacity_bytes * 0.85)
    except Exception:
        cap = 48 << 20   # conservative fallback that still fits v7x's 64 MiB/TC
    vmem_limit = int(min(max(est, 8 << 20), cap))
    # TODO(synk): working sets above `cap` (very large N*M) need a tiled variant;
    # a batched leading grid axis would also be added here for many (x, y) pairs.

    kernel = functools.partial(_ot_uot_kernel, reg=float(ot_reg),
                               reg_m=float(ot_tau), num_iters=int(num_iters))

    flow_t, dist = pl.pallas_call(
        kernel,
        out_shape=(jax.ShapeDtypeStruct((m, n), jnp.float32),
                   jax.ShapeDtypeStruct((1, 1), jnp.float32)),
        in_specs=[pl.BlockSpec((n, d), lambda: (0, 0)),
                  pl.BlockSpec((m, d), lambda: (0, 0))],
        out_specs=(pl.BlockSpec((m, n), lambda: (0, 0)),
                   pl.BlockSpec((1, 1), lambda: (0, 0))),
        compiler_params=pltpu.CompilerParams(vmem_limit_bytes=vmem_limit),
    )(x2, y2)

    # pi.T.unsqueeze(0).unsqueeze(0): the kernel already produced pi^T (M, N).
    return flow_t[None, None], dist[0, 0]


def reference(x, y, *, ot_reg=OT_REG, ot_tau=OT_TAU, num_iters=NUM_ITERS):
    """Plain-JAX reference of the PyTorch forward (f32, fixed iteration count)."""
    n, d = x.shape[0], x.shape[-1]
    m = y.shape[0]
    xs = x.reshape(n, d).astype(jnp.float32)
    ys = y.reshape(m, d).astype(jnp.float32)
    xs = xs - jnp.min(xs, axis=-1, keepdims=True)
    ys = ys - jnp.min(ys, axis=-1, keepdims=True)

    diff = xs[:, None, :] - ys[None, :, :]
    cost = jnp.sum(diff * diff, axis=-1)                              # (N, M)
    m_cost = cost / jnp.max(cost)
    k_mat = jnp.exp(-m_cost / ot_reg)
    fi = ot_tau / (ot_tau + ot_reg)
    a_val = 1.0 / n
    b_val = 1.0 / m
    u0 = jnp.full((n,), 1.0 / n, jnp.float32)
    v0 = jnp.full((m,), 1.0 / m, jnp.float32)

    def body(_, uv):
        u, v = uv
        kv = jnp.sum(k_mat * v[None, :], axis=1)
        u = jnp.exp(fi * jnp.log(a_val / kv))
        ktu = jnp.sum(k_mat * u[:, None], axis=0)
        v = jnp.exp(fi * jnp.log(b_val / ktu))
        return (u, v)

    u, v = lax.fori_loop(0, num_iters, body, (u0, v0))
    flow = u[:, None] * k_mat * v[None, :]
    dist = jnp.sum(cost * flow)
    return flow.T[None, None], dist


if __name__ == "__main__":
    key = jax.random.PRNGKey(0)
    kx, ky = jax.random.split(key)

    # Small, (8,128)-aligned demo shapes: x (N,1,D), y (M,1,D)
    N, M, D = 64, 128, 128
    x = jax.random.normal(kx, (N, 1, D), jnp.float32)
    y = jax.random.normal(ky, (M, 1, D), jnp.float32)

    pi_t, dist = ot_attn_assem(x, y)
    pi_t = jax.block_until_ready(pi_t)
    dist = jax.block_until_ready(dist)

    pi_ref, dist_ref = reference(x, y)

    assert pi_t.shape == (1, 1, M, N)
    assert jnp.allclose(pi_t, pi_ref, rtol=1e-2, atol=1e-5), "flow mismatch vs reference"
    assert abs(float(dist) - float(dist_ref)) <= 1e-2 * abs(float(dist_ref)) + 1e-5, \
        "dist mismatch vs reference"

    print("KERNEL_OK")
</pallas_src>

<mosaic_0001>
module attributes {stable_mosaic.version = 11 : i64} {
  func.func @_ot_uot_kernel(%arg0: memref<64x128xf32, #tpu.memory_space<vmem>>, %arg1: memref<128x128xf32, #tpu.memory_space<vmem>>, %arg2: memref<128x64xf32, #tpu.memory_space<vmem>>, %arg3: memref<1x1xf32, #tpu.memory_space<vmem>>) attributes {dimension_semantics = [], scalar_prefetch = 0 : i64, scratch_operands = 0 : i64, tpu.core_type = #tpu.core_type<tc>} {
    %c0 = arith.constant 0 : index
    %c0_0 = arith.constant 0 : index
    %0 = vector.load %arg0[%c0, %c0_0] : memref<64x128xf32, #tpu.memory_space<vmem>>, vector<64x128xf32>
    %c0_1 = arith.constant 0 : index
    %c0_2 = arith.constant 0 : index
    %1 = vector.load %arg1[%c0_1, %c0_2] : memref<128x128xf32, #tpu.memory_space<vmem>>, vector<128x128xf32>
    %cst = arith.constant dense<0x7F800000> : vector<64xf32>
    %2 = vector.multi_reduction <minimumf>, %0, %cst [1] : vector<64x128xf32> to vector<64xf32>
    %3 = vector.shape_cast %2 : vector<64xf32> to vector<64x1xf32>
    %4 = vector.broadcast %3 : vector<64x1xf32> to vector<64x128xf32>
    %5 = arith.subf %0, %4 : vector<64x128xf32>
    %cst_3 = arith.constant dense<0x7F800000> : vector<128xf32>
    %6 = vector.multi_reduction <minimumf>, %1, %cst_3 [1] : vector<128x128xf32> to vector<128xf32>
    %7 = vector.shape_cast %6 : vector<128xf32> to vector<128x1xf32>
    %8 = vector.broadcast %7 : vector<128x1xf32> to vector<128x128xf32>
    %9 = arith.subf %1, %8 : vector<128x128xf32>
    %cst_4 = arith.constant 1.000000e+00 : f32
    %10 = vector.broadcast %cst_4 : f32 to vector<1x128xf32>
    %cst_5 = arith.constant dense<0.000000e+00> : vector<64x128xf32>
    %11 = tpu.matmul %5, %9, %cst_5 {dimension_numbers = #tpu.dot_dimension_numbers<[1], [1], [0], [0], [0, 0, 1, 0], [], []>} : vector<64x128xf32>, vector<128x128xf32>, vector<64x128xf32> -> vector<64x128xf32>
    %cst_6 = arith.constant dense<0.000000e+00> : vector<128x64xf32>
    %12 = tpu.matmul %9, %5, %cst_6 {dimension_numbers = #tpu.dot_dimension_numbers<[1], [1], [0], [0], [0, 0, 1, 0], [], []>} : vector<128x128xf32>, vector<64x128xf32>, vector<128x64xf32> -> vector<128x64xf32>
    %13 = arith.mulf %5, %5 : vector<64x128xf32>
    %cst_7 = arith.constant dense<0.000000e+00> : vector<64xf32>
    %14 = vector.multi_reduction <add>, %13, %cst_7 [1] : vector<64x128xf32> to vector<64xf32>
    %15 = vector.shape_cast %14 : vector<64xf32> to vector<64x1xf32>
    %16 = arith.mulf %9, %9 : vector<128x128xf32>
    %cst_8 = arith.constant dense<0.000000e+00> : vector<128xf32>
    %17 = vector.multi_reduction <add>, %16, %cst_8 [1] : vector<128x128xf32> to vector<128xf32>
    %18 = vector.shape_cast %17 : vector<128xf32> to vector<128x1xf32>
    %19 = arith.mulf %5, %5 : vector<64x128xf32>
    %cst_9 = arith.constant dense<0.000000e+00> : vector<1x64xf32>
    %20 = tpu.matmul %10, %19, %cst_9 {dimension_numbers = #tpu.dot_dimension_numbers<[1], [1], [0], [0], [0, 0, 1, 0], [], []>} : vector<1x128xf32>, vector<64x128xf32>, vector<1x64xf32> -> vector<1x64xf32>
    %21 = arith.mulf %9, %9 : vector<128x128xf32>
    %cst_10 = arith.constant dense<0.000000e+00> : vector<1x128xf32>
    %22 = tpu.matmul %10, %21, %cst_10 {dimension_numbers = #tpu.dot_dimension_numbers<[1], [1], [0], [0], [0, 0, 1, 0], [], []>} : vector<1x128xf32>, vector<128x128xf32>, vector<1x128xf32> -> vector<1x128xf32>
    %23 = vector.broadcast %15 : vector<64x1xf32> to vector<64x128xf32>
    %24 = vector.broadcast %22 : vector<1x128xf32> to vector<64x128xf32>
    %25 = arith.addf %23, %24 : vector<64x128xf32>
    %cst_11 = arith.constant 2.000000e+00 : f32
    %26 = vector.broadcast %cst_11 : f32 to vector<64x128xf32>
    %27 = arith.mulf %26, %11 : vector<64x128xf32>
    %28 = arith.subf %25, %27 : vector<64x128xf32>
    %cst_12 = arith.constant 0.000000e+00 : f32
    %29 = vector.broadcast %cst_12 : f32 to vector<64x128xf32>
    %30 = arith.maximumf %28, %29 : vector<64x128xf32>
    %31 = vector.broadcast %18 : vector<128x1xf32> to vector<128x64xf32>
    %32 = vector.broadcast %20 : vector<1x64xf32> to vector<128x64xf32>
    %33 = arith.addf %31, %32 : vector<128x64xf32>
    %cst_13 = arith.constant 2.000000e+00 : f32
    %34 = vector.broadcast %cst_13 : f32 to vector<128x64xf32>
    %35 = arith.mulf %34, %12 : vector<128x64xf32>
    %36 = arith.subf %33, %35 : vector<128x64xf32>
    %cst_14 = arith.constant 0.000000e+00 : f32
    %37 = vector.broadcast %cst_14 : f32 to vector<128x64xf32>
    %38 = arith.maximumf %36, %37 : vector<128x64xf32>
    %cst_15 = arith.constant dense<0xFF800000> : vector<64xf32>
    %39 = vector.multi_reduction <maximumf>, %30, %cst_15 [1] : vector<64x128xf32> to vector<64xf32>
    %40 = vector.shape_cast %39 : vector<64xf32> to vector<64x1xf32>
    %cst_16 = arith.constant dense<0xFF800000> : vector<1xf32>
    %41 = vector.multi_reduction <maximumf>, %40, %cst_16 [0] : vector<64x1xf32> to vector<1xf32>
    %42 = vector.shape_cast %41 : vector<1xf32> to vector<1x1xf32>
    %cst_17 = arith.constant 1.000000e-30 : f32
    %43 = vector.broadcast %cst_17 : f32 to vector<1x1xf32>
    %44 = arith.maximumf %42, %43 : vector<1x1xf32>
    %cst_18 = arith.constant -1.000000e+01 : f32
    %45 = vector.broadcast %cst_18 : f32 to vector<1x1xf32>
    %46 = arith.divf %45, %44 : vector<1x1xf32>
    %47 = vector.broadcast %46 : vector<1x1xf32> to vector<64x128xf32>
    %48 = arith.mulf %30, %47 : vector<64x128xf32>
    %49 = math.exp %48 : vector<64x128xf32>
    %50 = vector.broadcast %46 : vector<1x1xf32> to vector<128x64xf32>
    %51 = arith.mulf %38, %50 : vector<128x64xf32>
    %52 = math.exp %51 : vector<128x64xf32>
    %cst_19 = arith.constant 1.562500e-02 : f32
    %53 = vector.broadcast %cst_19 : f32 to vector<1x64xf32>
    %cst_20 = arith.constant 7.812500e-03 : f32
    %54 = vector.broadcast %cst_20 : f32 to vector<1x128xf32>
    %c0_i32 = arith.constant 0 : i32
    %c500_i32 = arith.constant 500 : i32
    %55 = arith.addi %c0_i32, %c500_i32 : i32
    %c1_i32 = arith.constant 1 : i32
    %56:2 = scf.for %arg4 = %c0_i32 to %55 step %c1_i32 iter_args(%arg5 = %53, %arg6 = %54) -> (vector<1x64xf32>, vector<1x128xf32>)  : i32 {
      %cst_29 = arith.constant dense<0.000000e+00> : vector<1x64xf32>
      %74 = tpu.matmul %arg6, %52, %cst_29 {dimension_numbers = #tpu.dot_dimension_numbers<[1], [0], [0], [1], [0, 0, 1, 1], [], []>} : vector<1x128xf32>, vector<128x64xf32>, vector<1x64xf32> -> vector<1x64xf32>
      %cst_30 = arith.constant 1.000000e-30 : f32
      %75 = vector.broadcast %cst_30 : f32 to vector<1x64xf32>
      %76 = arith.maximumf %74, %75 : vector<1x64xf32>
      %77 = math.log %76 : vector<1x64xf32>
      %cst_31 = arith.constant 0.833333313 : f32
      %78 = vector.broadcast %cst_31 : f32 to vector<1x64xf32>
      %79 = arith.mulf %78, %77 : vector<1x64xf32>
      %cst_32 = arith.constant -3.46573591 : f32
      %80 = vector.broadcast %cst_32 : f32 to vector<1x64xf32>
      %81 = arith.subf %80, %79 : vector<1x64xf32>
      %82 = math.exp %81 : vector<1x64xf32>
      %cst_33 = arith.constant dense<0.000000e+00> : vector<1x128xf32>
      %83 = tpu.matmul %82, %49, %cst_33 {dimension_numbers = #tpu.dot_dimension_numbers<[1], [0], [0], [1], [0, 0, 1, 1], [], []>} : vector<1x64xf32>, vector<64x128xf32>, vector<1x128xf32> -> vector<1x128xf32>
      %cst_34 = arith.constant 1.000000e-30 : f32
      %84 = vector.broadcast %cst_34 : f32 to vector<1x128xf32>
      %85 = arith.maximumf %83, %84 : vector<1x128xf32>
      %86 = math.log %85 : vector<1x128xf32>
      %cst_35 = arith.constant 0.833333313 : f32
      %87 = vector.broadcast %cst_35 : f32 to vector<1x128xf32>
      %88 = arith.mulf %87, %86 : vector<1x128xf32>
      %cst_36 = arith.constant -4.04335833 : f32
      %89 = vector.broadcast %cst_36 : f32 to vector<1x128xf32>
      %90 = arith.subf %89, %88 : vector<1x128xf32>
      %91 = math.exp %90 : vector<1x128xf32>
      %cst_37 = arith.constant dense<0.000000e+00> : vector<1x64xf32>
      %92 = tpu.matmul %91, %52, %cst_37 {dimension_numbers = #tpu.dot_dimension_numbers<[1], [0], [0], [1], [0, 0, 1, 1], [], []>} : vector<1x128xf32>, vector<128x64xf32>, vector<1x64xf32> -> vector<1x64xf32>
      %cst_38 = arith.constant 1.000000e-30 : f32
      %93 = vector.broadcast %cst_38 : f32 to vector<1x64xf32>
      %94 = arith.maximumf %92, %93 : vector<1x64xf32>
      %95 = math.log %94 : vector<1x64xf32>
      %cst_39 = arith.constant 0.833333313 : f32
      %96 = vector.broadcast %cst_39 : f32 to vector<1x64xf32>
      %97 = arith.mulf %96, %95 : vector<1x64xf32>
      %cst_40 = arith.constant -3.46573591 : f32
      %98 = vector.broadcast %cst_40 : f32 to vector<1x64xf32>
      %99 = arith.subf %98, %97 : vector<1x64xf32>
      %100 = math.exp %99 : vector<1x64xf32>
      %cst_41 = arith.constant dense<0.000000e+00> : vector<1x128xf32>
      %101 = tpu.matmul %100, %49, %cst_41 {dimension_numbers = #tpu.dot_dimension_numbers<[1], [0], [0], [1], [0, 0, 1, 1], [], []>} : vector<1x64xf32>, vector<64x128xf32>, vector<1x128xf32> -> vector<1x128xf32>
      %cst_42 = arith.constant 1.000000e-30 : f32
      %102 = vector.broadcast %cst_42 : f32 to vector<1x128xf32>
      %103 = arith.maximumf %101, %102 : vector<1x128xf32>
      %104 = math.log %103 : vector<1x128xf32>
      %cst_43 = arith.constant 0.833333313 : f32
      %105 = vector.broadcast %cst_43 : f32 to vector<1x128xf32>
      %106 = arith.mulf %105, %104 : vector<1x128xf32>
      %cst_44 = arith.constant -4.04335833 : f32
      %107 = vector.broadcast %cst_44 : f32 to vector<1x128xf32>
      %108 = arith.subf %107, %106 : vector<1x128xf32>
      %109 = math.exp %108 : vector<1x128xf32>
      scf.yield %100, %109 : vector<1x64xf32>, vector<1x128xf32>
    }
    %57 = tpu.iota {dimensions = array<i32: 0>} : vector<128x128xi32>
    %58 = tpu.iota {dimensions = array<i32: 1>} : vector<128x128xi32>
    %59 = arith.cmpi eq, %57, %58 : vector<128x128xi32>
    %cst_21 = arith.constant 0.000000e+00 : f32
    %60 = vector.shape_cast %56#1 : vector<1x128xf32> to vector<1x128xf32>
    %61 = vector.broadcast %60 : vector<1x128xf32> to vector<128x128xf32>
    %62 = vector.broadcast %cst_21 : f32 to vector<128x128xf32>
    %63 = arith.select %59, %61, %62 : vector<128x128xi1>, vector<128x128xf32>
    %64 = vector.broadcast %56#0 : vector<1x64xf32> to vector<128x64xf32>
    %65 = arith.mulf %52, %64 : vector<128x64xf32>
    %cst_22 = arith.constant dense<0.000000e+00> : vector<128x64xf32>
    %66 = tpu.matmul %63, %65, %cst_22 {dimension_numbers = #tpu.dot_dimension_numbers<[1], [0], [0], [1], [0, 0, 1, 1], [], []>} : vector<128x128xf32>, vector<128x64xf32>, vector<128x64xf32> -> vector<128x64xf32>
    %c0_23 = arith.constant 0 : index
    %c0_24 = arith.constant 0 : index
    %67 = vector.load %arg2[%c0_23, %c0_24] : memref<128x64xf32, #tpu.memory_space<vmem>>, vector<128x64xf32>
    tpu.vector_store %arg2[%c0_23, %c0_24], %66 {strides = array<i32>} : memref<128x64xf32, #tpu.memory_space<vmem>>, vector<128x64xf32>,
    %68 = arith.mulf %38, %66 : vector<128x64xf32>
    %cst_25 = arith.constant dense<0.000000e+00> : vector<128xf32>
    %69 = vector.multi_reduction <add>, %68, %cst_25 [1] : vector<128x64xf32> to vector<128xf32>
    %70 = vector.shape_cast %69 : vector<128xf32> to vector<128x1xf32>
    %cst_26 = arith.constant dense<0.000000e+00> : vector<1xf32>
    %71 = vector.multi_reduction <add>, %70, %cst_26 [0] : vector<128x1xf32> to vector<1xf32>
    %72 = vector.shape_cast %71 : vector<1xf32> to vector<1x1xf32>
    %c0_27 = arith.constant 0 : index
    %c0_28 = arith.constant 0 : index
    %73 = vector.load %arg3[%c0_27, %c0_28] : memref<1x1xf32, #tpu.memory_space<vmem>>, vector<1x1xf32>
    tpu.vector_store %arg3[%c0_27, %c0_28], %72 {strides = array<i32>} : memref<1x1xf32, #tpu.memory_space<vmem>>, vector<1x1xf32>,
    return
  }
}

</mosaic_0001>

<llo_original>
// kernel: tpu_custom_call.1
$region0: #{tpu_custom_call.1}
  #allocation0 [shape = 'u32[]', space=smem, size = 0x4, offset = 0x4, fixed_abs, tag = 'smem constant byte address 0x4 - core index']
  #allocation1 [shape = 'u32[72,128]{1,0:T(1,128)}', space=vmem, size = 0x9000, scoped, tag = 'internal scratch']
  %s0 = inlined_call_operand.hbm [shape: f32[64,128], index: 0, kind: input, shape index: {}]
  %s1 = inlined_call_operand.hbm [shape: f32[128,128], index: 1, kind: input, shape index: {}]
  %s2 = inlined_call_operand.vmem [shape: f32[128,64], index: 2, kind: output, shape index: {0}]
  %s3 = inlined_call_operand.hbm [shape: f32[1,1], index: 3, kind: output, shape index: {1}]
  %4 = xla_tuple %s2, %s3
  %s5 = sld [smem:[#allocation0]]
  $region41: #{tpu_custom_call.1} parent=0
    _
  %s7 = ssub.s32 1, %s5
  %s8 = scalar_select 0, %s7, %s5
  $region1: #{tpu_custom_call.1} parent=0
    #allocation2 [shape = 'u8[32768]{0}', space=vmem, size = 0x8000, scoped, tag = 'input window, operand 0, single buffered']
    #allocation3 [shape = 's32[1]{0}', space=sflag, size = 0x4, scoped, tag = 'scoped memory for tpu_custom_call.1']
    #allocation4 [shape = 's32[1]{0}', space=sflag, size = 0x4, scoped, tag = 'scoped memory for tpu_custom_call.1']
    #allocation5 [shape = 'u8[65536]{0}', space=vmem, size = 0x10000, scoped, tag = 'input window, operand 1, single buffered']
    #allocation6 [shape = 's32[1]{0}', space=sflag, size = 0x4, scoped, tag = 'scoped memory for tpu_custom_call.1']
    #allocation7 [shape = 'u8[512]{0}', space=vmem, size = 0x400, scoped, tag = 'output window, operand 1, single buffered']
    %9 = vsyncpa [#allocation3], 0
    %10 = vsyncpa [#allocation6], 0
    %11 = vsyncpa [#allocation4], 0
    // Predicated region
    $region2: #{tpu_custom_call.1} parent=1 // pred_check
      _
    $region3: #{tpu_custom_call.1} parent=1 // pred_check_branch
      %13 = sbr.rel (0) target = $region5
    $region4: #{tpu_custom_call.1} parent=1 // pred_region
      %15 = vsyncadd [#allocation3], 0
      %s16 = sshll.u32 %s0, 4
      %s17 = int_to_ptr.hbm [resolvable:$true] %s16
      %s18 = sshll.u32 [#allocation2], 4
      %s19 = int_to_ptr.vmem [resolvable:$true] %s18
      %24 = dma.hbm_to_vmem [thread:$0]  %s17, 1024, %s19, [#allocation3], 128, 128, 8
    $region5: #{tpu_custom_call.1} parent=1 // pred_fallthru
      _
    // Predicated region
    $region6: #{tpu_custom_call.1} parent=1 // pred_check
      _
    $region7: #{tpu_custom_call.1} parent=1 // pred_check_branch
      %26 = sbr.rel (0) target = $region9
    $region8: #{tpu_custom_call.1} parent=1 // pred_region
      %28 = vsyncadd [#allocation6], 0
      %s29 = sshll.u32 %s1, 4
      %s30 = int_to_ptr.hbm [resolvable:$true] %s29
      %s31 = sshll.u32 [#allocation5], 4
      %s32 = int_to_ptr.vmem [resolvable:$true] %s31
      %37 = dma.hbm_to_vmem [thread:$0]  %s30, 2048, %s32, [#allocation6], 128, 128, 8
    $region9: #{tpu_custom_call.1} parent=1 // pred_fallthru
      _
    // Predicated region
    $region10: #{tpu_custom_call.1} parent=1 // pred_check
      _
    $region11: #{tpu_custom_call.1} parent=1 // pred_check_branch
      %39 = sbr.rel (0) target = $region13
    $region12: #{tpu_custom_call.1} parent=1 // pred_region
      %41 = dma.done [#allocation3], 1024
    $region13: #{tpu_custom_call.1} parent=1 // pred_fallthru
      _
    // Predicated region
    $region14: #{tpu_custom_call.1} parent=1 // pred_check
      _
    $region15: #{tpu_custom_call.1} parent=1 // pred_check_branch
      %43 = sbr.rel (0) target = $region17
    $region16: #{tpu_custom_call.1} parent=1 // pred_region
      %45 = dma.done [#allocation6], 2048
    $region17: #{tpu_custom_call.1} parent=1 // pred_fallthru
      _
    %v46 = vld [vmem:[#allocation2] sm:$0xff]
    %v47 = vld [vmem:[#allocation2 + $0x8] sm:$0xff]
    %v48 = vld [vmem:[#allocation2 + $0x10] sm:$0xff]
    %v49 = vld [vmem:[#allocation2 + $0x18] sm:$0xff]
    %v50 = vld [vmem:[#allocation2 + $0x20] sm:$0xff]
    %v51 = vld [vmem:[#allocation2 + $0x28] sm:$0xff]
    %v52 = vld [vmem:[#allocation2 + $0x30] sm:$0xff]
    %v53 = vld [vmem:[#allocation2 + $0x38] sm:$0xff]
    %v54 = vld [vmem:[#allocation5] sm:$0xff]
    %v55 = vld [vmem:[#allocation5 + $0x8] sm:$0xff]
    %v56 = vld [vmem:[#allocation5 + $0x10] sm:$0xff]
    %v57 = vld [vmem:[#allocation5 + $0x18] sm:$0xff]
    %v58 = vld [vmem:[#allocation5 + $0x20] sm:$0xff]
    %v59 = vld [vmem:[#allocation5 + $0x28] sm:$0xff]
    %v60 = vld [vmem:[#allocation5 + $0x30] sm:$0xff]
    %v61 = vld [vmem:[#allocation5 + $0x38] sm:$0xff]
    %v62 = vld [vmem:[#allocation5 + $0x40] sm:$0xff]
    %v63 = vld [vmem:[#allocation5 + $0x48] sm:$0xff]
    %v64 = vld [vmem:[#allocation5 + $0x50] sm:$0xff]
    %v65 = vld [vmem:[#allocation5 + $0x58] sm:$0xff]
    %v66 = vld [vmem:[#allocation5 + $0x60] sm:$0xff]
    %v67 = vld [vmem:[#allocation5 + $0x68] sm:$0xff]
    %v68 = vld [vmem:[#allocation5 + $0x70] sm:$0xff]
    %v69 = vld [vmem:[#allocation5 + $0x78] sm:$0xff]
    %70 = vmin.xlane.f32.xlu0 %v46
    %v71 = vpop.xlane.xlu0 %70
    %72 = vmin.xlane.f32.xlu0 %v47
    %v73 = vpop.xlane.xlu0 %72
    %74 = vmin.xlane.f32.xlu0 %v48
    %v75 = vpop.xlane.xlu0 %74
    %76 = vmin.xlane.f32.xlu0 %v49
    %v77 = vpop.xlane.xlu0 %76
    %78 = vmin.xlane.f32.xlu0 %v50
    %v79 = vpop.xlane.xlu0 %78
    %80 = vmin.xlane.f32.xlu0 %v51
    %v81 = vpop.xlane.xlu0 %80
    %82 = vmin.xlane.f32.xlu0 %v52
    %v83 = vpop.xlane.xlu0 %82
    %84 = vmin.xlane.f32.xlu0 %v53
    %v85 = vpop.xlane.xlu0 %84
    %v86 = vsub.f32 %v46, %v71
    %v87 = vsub.f32 %v47, %v73
    %v88 = vsub.f32 %v48, %v75
    %v89 = vsub.f32 %v49, %v77
    %v90 = vsub.f32 %v50, %v79
    %v91 = vsub.f32 %v51, %v81
    %v92 = vsub.f32 %v52, %v83
    %v93 = vsub.f32 %v53, %v85
    %94 = vmin.xlane.f32.xlu0 %v54
    %v95 = vpop.xlane.xlu0 %94
    %96 = vmin.xlane.f32.xlu0 %v55
    %v97 = vpop.xlane.xlu0 %96
    %98 = vmin.xlane.f32.xlu0 %v56
    %v99 = vpop.xlane.xlu0 %98
    %100 = vmin.xlane.f32.xlu0 %v57
    %v101 = vpop.xlane.xlu0 %100
    %102 = vmin.xlane.f32.xlu0 %v58
    %v103 = vpop.xlane.xlu0 %102
    %104 = vmin.xlane.f32.xlu0 %v59
    %v105 = vpop.xlane.xlu0 %104
    %106 = vmin.xlane.f32.xlu0 %v60
    %v107 = vpop.xlane.xlu0 %106
    %108 = vmin.xlane.f32.xlu0 %v61
    %v109 = vpop.xlane.xlu0 %108
    %110 = vmin.xlane.f32.xlu0 %v62
    %v111 = vpop.xlane.xlu0 %110
    %112 = vmin.xlane.f32.xlu0 %v63
    %v113 = vpop.xlane.xlu0 %112
    %114 = vmin.xlane.f32.xlu0 %v64
    %v115 = vpop.xlane.xlu0 %114
    %116 = vmin.xlane.f32.xlu0 %v65
    %v117 = vpop.xlane.xlu0 %116
    %118 = vmin.xlane.f32.xlu0 %v66
    %v119 = vpop.xlane.xlu0 %118
    %120 = vmin.xlane.f32.xlu0 %v67
    %v121 = vpop.xlane.xlu0 %120
    %122 = vmin.xlane.f32.xlu0 %v68
    %v123 = vpop.xlane.xlu0 %122
    %124 = vmin.xlane.f32.xlu0 %v69
    %v125 = vpop.xlane.xlu0 %124
    %v126 = vsub.f32 %v54, %v95
    %v127 = vsub.f32 %v55, %v97
    %v128 = vsub.f32 %v56, %v99
    %v129 = vsub.f32 %v57, %v101
    %v130 = vsub.f32 %v58, %v103
    %v131 = vsub.f32 %v59, %v105
    %v132 = vsub.f32 %v60, %v107
    %v133 = vsub.f32 %v61, %v109
    %v134 = vsub.f32 %v62, %v111
    %v135 = vsub.f32 %v63, %v113
    %v136 = vsub.f32 %v64, %v115
    %v137 = vsub.f32 %v65, %v117
    %v138 = vsub.f32 %v66, %v119
    %v139 = vsub.f32 %v67, %v121
    %v140 = vsub.f32 %v68, %v123
    %v141 = vsub.f32 %v69, %v125
    %142 = vmatpush.xpose.msra.mxu0 %v141
    %143 = vmatpush.xpose.msra.mxu0 %v140
    %144 = vmatpush.xpose.msra.mxu0 %v139
    %145 = vmatpush.xpose.msra.mxu0 %v138
    %146 = vmatpush.xpose.msra.mxu0 %v137
    %147 = vmatpush.xpose.msra.mxu0 %v136
    %148 = vmatpush.xpose.msra.mxu0 %v135
    %149 = vmatpush.xpose.msra.mxu0 %v134
    %150 = vmatpush.xpose.msra.mxu0 %v133
    %151 = vmatpush.xpose.msra.mxu0 %v132
    %152 = vmatpush.xpose.msra.mxu0 %v131
    %153 = vmatpush.xpose.msra.mxu0 %v130
    %154 = vmatpush.xpose.msra.mxu0 %v129
    %155 = vmatpush.xpose.msra.mxu0 %v128
    %156 = vmatpush.xpose.msra.mxu0 %v127
    %157 = vmatpush.xpose.msra.mxu0 %v126
    %158 = vmatmul.f32.gmra.mxu0 %v86
    %v159 = vpop.f32.mrf.mxu0
    %v160 = vadd.f32 0.0, %v159
    %161 = vmatmul.f32.gmra.mxu0 %v87
    %v162 = vpop.f32.mrf.mxu0
    %v163 = vadd.f32 0.0, %v162
    %164 = vmatmul.f32.gmra.mxu0 %v88
    %v165 = vpop.f32.mrf.mxu0
    %v166 = vadd.f32 0.0, %v165
    %167 = vmatmul.f32.gmra.mxu0 %v89
    %v168 = vpop.f32.mrf.mxu0
    %v169 = vadd.f32 0.0, %v168
    %170 = vmatmul.f32.gmra.mxu0 %v90
    %v171 = vpop.f32.mrf.mxu0
    %v172 = vadd.f32 0.0, %v171
    %173 = vmatmul.f32.gmra.mxu0 %v91
    %v174 = vpop.f32.mrf.mxu0
    %v175 = vadd.f32 0.0, %v174
    %176 = vmatmul.f32.gmra.mxu0 %v92
    %v177 = vpop.f32.mrf.mxu0
    %v178 = vadd.f32 0.0, %v177
    %179 = vmatmul.f32.gmra.mxu0 %v93
    %v180 = vpop.f32.mrf.mxu0
    %v181 = vadd.f32 0.0, %v180
    %182 = vdwg.mxu0
    %183 = vmatpush.xpose.msra.mxu0 0.0
    %184 = vmatpush.xpose.msra.mxu0 0.0
    %185 = vmatpush.xpose.msra.mxu0 0.0
    %186 = vmatpush.xpose.msra.mxu0 0.0
    %187 = vmatpush.xpose.msra.mxu0 0.0
    %188 = vmatpush.xpose.msra.mxu0 0.0
    %189 = vmatpush.xpose.msra.mxu0 0.0
    %190 = vmatpush.xpose.msra.mxu0 0.0
    %191 = vmatpush.xpose.msra.mxu0 %v93
    %192 = vmatpush.xpose.msra.mxu0 %v92
    %193 = vmatpush.xpose.msra.mxu0 %v91
    %194 = vmatpush.xpose.msra.mxu0 %v90
    %195 = vmatpush.xpose.msra.mxu0 %v89
    %196 = vmatpush.xpose.msra.mxu0 %v88
    %197 = vmatpush.xpose.msra.mxu0 %v87
    %198 = vmatpush.xpose.msra.mxu0 %v86
    %199 = vmatmul.f32.gmra.mxu0 %v126
    %v200 = vpop.f32.mrf.mxu0
    %v201 = vadd.f32 0.0, %v200
    %202 = vmatmul.f32.gmra.mxu0 %v127
    %v203 = vpop.f32.mrf.mxu0
    %v204 = vadd.f32 0.0, %v203
    %205 = vmatmul.f32.gmra.mxu0 %v128
    %v206 = vpop.f32.mrf.mxu0
    %v207 = vadd.f32 0.0, %v206
    %208 = vmatmul.f32.gmra.mxu0 %v129
    %v209 = vpop.f32.mrf.mxu0
    %v210 = vadd.f32 0.0, %v209
    %211 = vmatmul.f32.gmra.mxu0 %v130
    %v212 = vpop.f32.mrf.mxu0
    %v213 = vadd.f32 0.0, %v212
    %214 = vmatmul.f32.gmra.mxu0 %v131
    %v215 = vpop.f32.mrf.mxu0
    %v216 = vadd.f32 0.0, %v215
    %217 = vmatmul.f32.gmra.mxu0 %v132
    %v218 = vpop.f32.mrf.mxu0
    %v219 = vadd.f32 0.0, %v218
    %220 = vmatmul.f32.gmra.mxu0 %v133
    %v221 = vpop.f32.mrf.mxu0
    %v222 = vadd.f32 0.0, %v221
    %223 = vmatmul.f32.gmra.mxu0 %v134
    %v224 = vpop.f32.mrf.mxu0
    %v225 = vadd.f32 0.0, %v224
    %226 = vmatmul.f32.gmra.mxu0 %v135
    %v227 = vpop.f32.mrf.mxu0
    %v228 = vadd.f32 0.0, %v227
    %229 = vmatmul.f32.gmra.mxu0 %v136
    %v230 = vpop.f32.mrf.mxu0
    %v231 = vadd.f32 0.0, %v230
    %232 = vmatmul.f32.gmra.mxu0 %v137
    %v233 = vpop.f32.mrf.mxu0
    %v234 = vadd.f32 0.0, %v233
    %235 = vmatmul.f32.gmra.mxu0 %v138
    %v236 = vpop.f32.mrf.mxu0
    %v237 = vadd.f32 0.0, %v236
    %238 = vmatmul.f32.gmra.mxu0 %v139
    %v239 = vpop.f32.mrf.mxu0
    %v240 = vadd.f32 0.0, %v239
    %241 = vmatmul.f32.gmra.mxu0 %v140
    %v242 = vpop.f32.mrf.mxu0
    %v243 = vadd.f32 0.0, %v242
    %244 = vmatmul.f32.gmra.mxu0 %v141
    %v245 = vpop.f32.mrf.mxu0
    %v246 = vadd.f32 0.0, %v245
    %247 = vdwg.mxu0
    %v248 = vmul.f32 %v86, %v86
    %v249 = vmul.f32 %v87, %v87
    %v250 = vmul.f32 %v88, %v88
    %v251 = vmul.f32 %v89, %v89
    %v252 = vmul.f32 %v90, %v90
    %v253 = vmul.f32 %v91, %v91
    %v254 = vmul.f32 %v92, %v92
    %v255 = vmul.f32 %v93, %v93
    %256 = vadd.xlane.f32.xlu0 %v248
    %v257 = vpop.xlane.xlu0 %256
    %258 = vadd.xlane.f32.xlu0 %v249
    %v259 = vpop.xlane.xlu0 %258
    %260 = vadd.xlane.f32.xlu0 %v250
    %v261 = vpop.xlane.xlu0 %260
    %262 = vadd.xlane.f32.xlu0 %v251
    %v263 = vpop.xlane.xlu0 %262
    %264 = vadd.xlane.f32.xlu0 %v252
    %v265 = vpop.xlane.xlu0 %264
    %266 = vadd.xlane.f32.xlu0 %v253
    %v267 = vpop.xlane.xlu0 %266
    %268 = vadd.xlane.f32.xlu0 %v254
    %v269 = vpop.xlane.xlu0 %268
    %270 = vadd.xlane.f32.xlu0 %v255
    %v271 = vpop.xlane.xlu0 %270
    %v272 = vmul.f32 %v126, %v126
    %v273 = vmul.f32 %v127, %v127
    %v274 = vmul.f32 %v128, %v128
    %v275 = vmul.f32 %v129, %v129
    %v276 = vmul.f32 %v130, %v130
    %v277 = vmul.f32 %v131, %v131
    %v278 = vmul.f32 %v132, %v132
    %v279 = vmul.f32 %v133, %v133
    %v280 = vmul.f32 %v134, %v134
    %v281 = vmul.f32 %v135, %v135
    %v282 = vmul.f32 %v136, %v136
    %v283 = vmul.f32 %v137, %v137
    %v284 = vmul.f32 %v138, %v138
    %v285 = vmul.f32 %v139, %v139
    %v286 = vmul.f32 %v140, %v140
    %v287 = vmul.f32 %v141, %v141
    %288 = vadd.xlane.f32.xlu0 %v272
    %v289 = vpop.xlane.xlu0 %288
    %290 = vadd.xlane.f32.xlu0 %v273
    %v291 = vpop.xlane.xlu0 %290
    %292 = vadd.xlane.f32.xlu0 %v274
    %v293 = vpop.xlane.xlu0 %292
    %294 = vadd.xlane.f32.xlu0 %v275
    %v295 = vpop.xlane.xlu0 %294
    %296 = vadd.xlane.f32.xlu0 %v276
    %v297 = vpop.xlane.xlu0 %296
    %298 = vadd.xlane.f32.xlu0 %v277
    %v299 = vpop.xlane.xlu0 %298
    %300 = vadd.xlane.f32.xlu0 %v278
    %v301 = vpop.xlane.xlu0 %300
    %302 = vadd.xlane.f32.xlu0 %v279
    %v303 = vpop.xlane.xlu0 %302
    %304 = vadd.xlane.f32.xlu0 %v280
    %v305 = vpop.xlane.xlu0 %304
    %306 = vadd.xlane.f32.xlu0 %v281
    %v307 = vpop.xlane.xlu0 %306
    %308 = vadd.xlane.f32.xlu0 %v282
    %v309 = vpop.xlane.xlu0 %308
    %310 = vadd.xlane.f32.xlu0 %v283
    %v311 = vpop.xlane.xlu0 %310
    %312 = vadd.xlane.f32.xlu0 %v284
    %v313 = vpop.xlane.xlu0 %312
    %314 = vadd.xlane.f32.xlu0 %v285
    %v315 = vpop.xlane.xlu0 %314
    %316 = vadd.xlane.f32.xlu0 %v286
    %v317 = vpop.xlane.xlu0 %316
    %318 = vadd.xlane.f32.xlu0 %v287
    %v319 = vpop.xlane.xlu0 %318
    %320 = vmatpush.xpose.msra.mxu0 0.0
    %321 = vmatpush.xpose.msra.mxu0 0.0
    %322 = vmatpush.xpose.msra.mxu0 0.0
    %323 = vmatpush.xpose.msra.mxu0 0.0
    %324 = vmatpush.xpose.msra.mxu0 0.0
    %325 = vmatpush.xpose.msra.mxu0 0.0
    %326 = vmatpush.xpose.msra.mxu0 0.0
    %327 = vmatpush.xpose.msra.mxu0 0.0
    %328 = vmatpush.xpose.msra.mxu0 %v255
    %329 = vmatpush.xpose.msra.mxu0 %v254
    %330 = vmatpush.xpose.msra.mxu0 %v253
    %331 = vmatpush.xpose.msra.mxu0 %v252
    %332 = vmatpush.xpose.msra.mxu0 %v251
    %333 = vmatpush.xpose.msra.mxu0 %v250
    %334 = vmatpush.xpose.msra.mxu0 %v249
    %335 = vmatpush.xpose.msra.mxu0 %v248
    %336 = vmatmul.f32.gmra.mxu0 1.0
    %v337 = vpop.f32.mrf.mxu0
    %v338 = vadd.f32 0.0, %v337
    %339 = vdwg.mxu0
    %340 = vmatpush.xpose.msra.mxu0 %v287
    %341 = vmatpush.xpose.msra.mxu0 %v286
    %342 = vmatpush.xpose.msra.mxu0 %v285
    %343 = vmatpush.xpose.msra.mxu0 %v284
    %344 = vmatpush.xpose.msra.mxu0 %v283
    %345 = vmatpush.xpose.msra.mxu0 %v282
    %346 = vmatpush.xpose.msra.mxu0 %v281
    %347 = vmatpush.xpose.msra.mxu0 %v280
    %348 = vmatpush.xpose.msra.mxu0 %v279
    %349 = vmatpush.xpose.msra.mxu0 %v278
    %350 = vmatpush.xpose.msra.mxu0 %v277
    %351 = vmatpush.xpose.msra.mxu0 %v276
    %352 = vmatpush.xpose.msra.mxu0 %v275
    %353 = vmatpush.xpose.msra.mxu0 %v274
    %354 = vmatpush.xpose.msra.mxu0 %v273
    %355 = vmatpush.xpose.msra.mxu0 %v272
    %356 = vmatmul.f32.gmra.mxu0 1.0
    %v357 = vpop.f32.mrf.mxu0
    %v358 = vadd.f32 0.0, %v357
    %359 = vdwg.mxu0
    %v360 = vperm.slane %v358, 0
    %v361 = vadd.f32 %v257, %v360
    %v362 = vadd.f32 %v259, %v360
    %v363 = vadd.f32 %v261, %v360
    %v364 = vadd.f32 %v263, %v360
    %v365 = vadd.f32 %v265, %v360
    %v366 = vadd.f32 %v267, %v360
    %v367 = vadd.f32 %v269, %v360
    %v368 = vadd.f32 %v271, %v360
    %v369 = vmul.f32 %v160, 2.0
    %v370 = vmul.f32 %v163, 2.0
    %v371 = vmul.f32 %v166, 2.0
    %v372 = vmul.f32 %v169, 2.0
    %v373 = vmul.f32 %v172, 2.0
    %v374 = vmul.f32 %v175, 2.0
    %v375 = vmul.f32 %v178, 2.0
    %v376 = vmul.f32 %v181, 2.0
    %v377 = vsub.f32 %v361, %v369
    %v378 = vsub.f32 %v362, %v370
    %v379 = vsub.f32 %v363, %v371
    %v380 = vsub.f32 %v364, %v372
    %v381 = vsub.f32 %v365, %v373
    %v382 = vsub.f32 %v366, %v374
    %v383 = vsub.f32 %v367, %v375
    %v384 = vsub.f32 %v368, %v376
    %v385 = vmax.f32 %v377, 0.0
    %v386 = vmax.f32 %v378, 0.0
    %v387 = vmax.f32 %v379, 0.0
    %v388 = vmax.f32 %v380, 0.0
    %v389 = vmax.f32 %v381, 0.0
    %v390 = vmax.f32 %v382, 0.0
    %v391 = vmax.f32 %v383, 0.0
    %v392 = vmax.f32 %v384, 0.0
    %v393 = vperm.slane %v338, 0
    %v394 = vadd.f32 %v289, %v393
    %v395 = vadd.f32 %v291, %v393
    %v396 = vadd.f32 %v293, %v393
    %v397 = vadd.f32 %v295, %v393
    %v398 = vadd.f32 %v297, %v393
    %v399 = vadd.f32 %v299, %v393
    %v400 = vadd.f32 %v301, %v393
    %v401 = vadd.f32 %v303, %v393
    %v402 = vadd.f32 %v305, %v393
    %v403 = vadd.f32 %v307, %v393
    %v404 = vadd.f32 %v309, %v393
    %v405 = vadd.f32 %v311, %v393
    %v406 = vadd.f32 %v313, %v393
    %v407 = vadd.f32 %v315, %v393
    %v408 = vadd.f32 %v317, %v393
    %v409 = vadd.f32 %v319, %v393
    %v410 = vmul.f32 %v201, 2.0
    %v411 = vmul.f32 %v204, 2.0
    %v412 = vmul.f32 %v207, 2.0
    %v413 = vmul.f32 %v210, 2.0
    %v414 = vmul.f32 %v213, 2.0
    %v415 = vmul.f32 %v216, 2.0
    %v416 = vmul.f32 %v219, 2.0
    %v417 = vmul.f32 %v222, 2.0
    %v418 = vmul.f32 %v225, 2.0
    %v419 = vmul.f32 %v228, 2.0
    %v420 = vmul.f32 %v231, 2.0
    %v421 = vmul.f32 %v234, 2.0
    %v422 = vmul.f32 %v237, 2.0
    %v423 = vmul.f32 %v240, 2.0
    %v424 = vmul.f32 %v243, 2.0
    %v425 = vmul.f32 %v246, 2.0
    %v426 = vsub.f32 %v394, %v410
    %v427 = vsub.f32 %v395, %v411
    %v428 = vsub.f32 %v396, %v412
    %v429 = vsub.f32 %v397, %v413
    %v430 = vsub.f32 %v398, %v414
    %v431 = vsub.f32 %v399, %v415
    %v432 = vsub.f32 %v400, %v416
    %v433 = vsub.f32 %v401, %v417
    %v434 = vsub.f32 %v402, %v418
    %v435 = vsub.f32 %v403, %v419
    %v436 = vsub.f32 %v404, %v420
    %v437 = vsub.f32 %v405, %v421
    %v438 = vsub.f32 %v406, %v422
    %v439 = vsub.f32 %v407, %v423
    %v440 = vsub.f32 %v408, %v424
    %v441 = vsub.f32 %v409, %v425
    %v442 = vmax.f32 %v426, 0.0
    %v443 = vmax.f32 %v427, 0.0
    %v444 = vmax.f32 %v428, 0.0
    %v445 = vmax.f32 %v429, 0.0
    %v446 = vmax.f32 %v430, 0.0
    %v447 = vmax.f32 %v431, 0.0
    %v448 = vmax.f32 %v432, 0.0
    %v449 = vmax.f32 %v433, 0.0
    %v450 = vmax.f32 %v434, 0.0
    %v451 = vmax.f32 %v435, 0.0
    %v452 = vmax.f32 %v436, 0.0
    %v453 = vmax.f32 %v437, 0.0
    %v454 = vmax.f32 %v438, 0.0
    %v455 = vmax.f32 %v439, 0.0
    %v456 = vmax.f32 %v440, 0.0
    %v457 = vmax.f32 %v441, 0.0
    %458 = vmax.xlane.f32.xlu0 %v385
    %v459 = vpop.xlane.xlu0 %458
    %460 = vmax.xlane.f32.xlu0 %v386
    %v461 = vpop.xlane.xlu0 %460
    %462 = vmax.xlane.f32.xlu0 %v387
    %v463 = vpop.xlane.xlu0 %462
    %464 = vmax.xlane.f32.xlu0 %v388
    %v465 = vpop.xlane.xlu0 %464
    %466 = vmax.xlane.f32.xlu0 %v389
    %v467 = vpop.xlane.xlu0 %466
    %468 = vmax.xlane.f32.xlu0 %v390
    %v469 = vpop.xlane.xlu0 %468
    %470 = vmax.xlane.f32.xlu0 %v391
    %v471 = vpop.xlane.xlu0 %470
    %472 = vmax.xlane.f32.xlu0 %v392
    %v473 = vpop.xlane.xlu0 %472
    %v474 = vmax.f32 %v459, %v467
    %v475 = vmax.f32 %v461, %v469
    %v476 = vmax.f32 %v463, %v471
    %v477 = vmax.f32 %v465, %v473
    %v478 = vmax.f32 %v474, %v475
    %v479 = vmax.f32 %v476, %v477
    %v480 = vmax.f32 %v478, %v479
    %v481 = vrot.slane %v480, 4
    %v482 = vmax.f32 %v480, %v481
    %v483 = vrot.slane %v482, 2
    %v484 = vmax.f32 %v482, %v483
    %v485 = vrot.slane %v484, 1
    %v486 = vmax.f32 %v484, %v485
    %v487 = vmax.f32 %v486, 1e-30
    %v488 = vrcp.pop %v487
    %v489 = vmul.f32 %v487, %v488
    %v490 = vsub.f32 1.0, %v489
    %v491 = vmul.f32 %v488, %v490
    %v492 = vadd.f32 %v488, %v491
    %vm493 = vweird.f32 %v487
    %vm494 = vweird.f32 %v488
    %vm495 = vmor %vm493, %vm494
    %v496 = vsel %vm495, %v488, %v492
    %v497 = vand.u32 2147483647, %v487
    %vm498 = vcmp.eq.f32.partialorder %v497, 8.507059e+37
    %v499 = vand.u32 %v487, 2147483648
    %v500 = vor.u32 1.1754944e-38, %v499
    %v501 = vsel %vm498, %v500, %v496
    %v502 = vmul.f32 -10.0, %v501
    %v503 = vmul.f32 %v385, %v502
    %v504 = vmul.f32 %v386, %v502
    %v505 = vmul.f32 %v387, %v502
    %v506 = vmul.f32 %v388, %v502
    %v507 = vmul.f32 %v389, %v502
    %v508 = vmul.f32 %v390, %v502
    %v509 = vmul.f32 %v391, %v502
    %v510 = vmul.f32 %v392, %v502
    %v511 = vmul.f32 %v503, 1.442695
    %v512 = vpow.pop %v511
    %v513 = vmul.f32 %v504, 1.442695
    %v514 = vpow.pop %v513
    %v515 = vmul.f32 %v505, 1.442695
    %v516 = vpow.pop %v515
    %v517 = vmul.f32 %v506, 1.442695
    %v518 = vpow.pop %v517
    %v519 = vmul.f32 %v507, 1.442695
    %v520 = vpow.pop %v519
    %v521 = vmul.f32 %v508, 1.442695
    %v522 = vpow.pop %v521
    %v523 = vmul.f32 %v509, 1.442695
    %v524 = vpow.pop %v523
    %v525 = vmul.f32 %v510, 1.442695
    %v526 = vpow.pop %v525
    %v527 = vmul.f32 %v442, %v502
    %v528 = vmul.f32 %v443, %v502
    %v529 = vmul.f32 %v444, %v502
    %v530 = vmul.f32 %v445, %v502
    %v531 = vmul.f32 %v446, %v502
    %v532 = vmul.f32 %v447, %v502
    %v533 = vmul.f32 %v448, %v502
    %v534 = vmul.f32 %v449, %v502
    %v535 = vmul.f32 %v450, %v502
    %v536 = vmul.f32 %v451, %v502
    %v537 = vmul.f32 %v452, %v502
    %v538 = vmul.f32 %v453, %v502
    %v539 = vmul.f32 %v454, %v502
    %v540 = vmul.f32 %v455, %v502
    %v541 = vmul.f32 %v456, %v502
    %v542 = vmul.f32 %v457, %v502
    %v543 = vmul.f32 %v527, 1.442695
    %v544 = vpow.pop %v543
    %v545 = vmul.f32 %v528, 1.442695
    %v546 = vpow.pop %v545
    %v547 = vmul.f32 %v529, 1.442695
    %v548 = vpow.pop %v547
    %v549 = vmul.f32 %v530, 1.442695
    %v550 = vpow.pop %v549
    %v551 = vmul.f32 %v531, 1.442695
    %v552 = vpow.pop %v551
    %v553 = vmul.f32 %v532, 1.442695
    %v554 = vpow.pop %v553
    %v555 = vmul.f32 %v533, 1.442695
    %v556 = vpow.pop %v555
    %v557 = vmul.f32 %v534, 1.442695
    %v558 = vpow.pop %v557
    %v559 = vmul.f32 %v535, 1.442695
    %v560 = vpow.pop %v559
    %v561 = vmul.f32 %v536, 1.442695
    %v562 = vpow.pop %v561
    %v563 = vmul.f32 %v537, 1.442695
    %v564 = vpow.pop %v563
    %v565 = vmul.f32 %v538, 1.442695
    %v566 = vpow.pop %v565
    %v567 = vmul.f32 %v539, 1.442695
    %v568 = vpow.pop %v567
    %v569 = vmul.f32 %v540, 1.442695
    %v570 = vpow.pop %v569
    %v571 = vmul.f32 %v541, 1.442695
    %v572 = vpow.pop %v571
    %v573 = vmul.f32 %v542, 1.442695
    %v574 = vpow.pop %v573
    loop: start=0, step=1, limit=500
    $region18: #{tpu_custom_call.1} parent=1 // loop_pre_header
      _
    $region19: #{tpu_custom_call.1} parent=1 // loop_header
      %s576 = sphi 0, %s580
      %p577 = scmp.ge.s32.totalorder %s576, 500
      %v581 = vphi 0.015625, %v667
      %v582 = vphi 0.0078125, %v697
    $region20: #{tpu_custom_call.1} parent=1 // loop_header_branch
      %579 = sbr.rel (%p577) target = $region24
    $region21: #{tpu_custom_call.1} parent=1 // loop_body
      %583 = vmatpush.msra.mxu0 %v574
      %584 = vmatpush.msra.mxu0 %v572
      %585 = vmatpush.msra.mxu0 %v570
      %586 = vmatpush.msra.mxu0 %v568
      %587 = vmatpush.msra.mxu0 %v566
      %588 = vmatpush.msra.mxu0 %v564
      %589 = vmatpush.msra.mxu0 %v562
      %590 = vmatpush.msra.mxu0 %v560
      %591 = vmatpush.msra.mxu0 %v558
      %592 = vmatpush.msra.mxu0 %v556
      %593 = vmatpush.msra.mxu0 %v554
      %594 = vmatpush.msra.mxu0 %v552
      %595 = vmatpush.msra.mxu0 %v550
      %596 = vmatpush.msra.mxu0 %v548
      %597 = vmatpush.msra.mxu0 %v546
      %598 = vmatpush.msra.mxu0 %v544
      %599 = vmatmul.f32.gmra.mxu0 %v582
      %v600 = vpop.f32.mrf.mxu0
      %v601 = vadd.f32 0.0, %v600
      %602 = vdwg.mxu0
      %v603 = vmax.f32 %v601, 1e-30
      %v604 = vlog2.pop %v603
      %v605 = vmul.f32 %v604, 0.6931472
      %v606 = vmul.f32 %v605, 0.8333333
      %v607 = vsub.f32 -3.465736, %v606
      %v608 = vmul.f32 %v607, 1.442695
      %v609 = vpow.pop %v608
      %vm610 = vcmask 523264
      %v612 = vsel %vm610, %v609, 0
      %614 = vmatpush.msra.mxu0 0.0
      %615 = vmatpush.msra.mxu0 0.0
      %616 = vmatpush.msra.mxu0 0.0
      %617 = vmatpush.msra.mxu0 0.0
      %618 = vmatpush.msra.mxu0 0.0
      %619 = vmatpush.msra.mxu0 0.0
      %620 = vmatpush.msra.mxu0 0.0
      %621 = vmatpush.msra.mxu0 0.0
      %622 = vmatpush.msra.mxu0 %v526
      %623 = vmatpush.msra.mxu0 %v524
      %624 = vmatpush.msra.mxu0 %v522
      %625 = vmatpush.msra.mxu0 %v520
      %626 = vmatpush.msra.mxu0 %v518
      %627 = vmatpush.msra.mxu0 %v516
      %628 = vmatpush.msra.mxu0 %v514
      %629 = vmatpush.msra.mxu0 %v512
      %630 = vmatmul.f32.gmra.mxu0 %v612
      %v631 = vpop.f32.mrf.mxu0
      %v632 = vadd.f32 0.0, %v631
      %633 = vdwg.mxu0
      %v634 = vmax.f32 %v632, 1e-30
      %v635 = vlog2.pop %v634
      %v636 = vmul.f32 %v635, 0.6931472
      %v637 = vmul.f32 %v636, 0.8333333
      %v638 = vsub.f32 -4.0433583, %v637
      %v639 = vmul.f32 %v638, 1.442695
      %v640 = vpow.pop %v639
      %641 = vmatpush.msra.mxu0 %v574
      %642 = vmatpush.msra.mxu0 %v572
      %643 = vmatpush.msra.mxu0 %v570
      %644 = vmatpush.msra.mxu0 %v568
      %645 = vmatpush.msra.mxu0 %v566
      %646 = vmatpush.msra.mxu0 %v564
      %647 = vmatpush.msra.mxu0 %v562
      %648 = vmatpush.msra.mxu0 %v560
      %649 = vmatpush.msra.mxu0 %v558
      %650 = vmatpush.msra.mxu0 %v556
      %651 = vmatpush.msra.mxu0 %v554
      %652 = vmatpush.msra.mxu0 %v552
      %653 = vmatpush.msra.mxu0 %v550
      %654 = vmatpush.msra.mxu0 %v548
      %655 = vmatpush.msra.mxu0 %v546
      %656 = vmatpush.msra.mxu0 %v544
      %657 = vmatmul.f32.gmra.mxu0 %v640
      %v658 = vpop.f32.mrf.mxu0
      %v659 = vadd.f32 0.0, %v658
      %660 = vdwg.mxu0
      %v661 = vmax.f32 %v659, 1e-30
      %v662 = vlog2.pop %v661
      %v663 = vmul.f32 %v662, 0.6931472
      %v664 = vmul.f32 %v663, 0.8333333
      %v665 = vsub.f32 -3.465736, %v664
      %v666 = vmul.f32 %v665, 1.442695
      %v667 = vpow.pop %v666
      %v669 = vsel %vm610, %v667, 0
      %671 = vmatpush.msra.mxu0 0.0
      %672 = vmatpush.msra.mxu0 0.0
      %673 = vmatpush.msra.mxu0 0.0
      %674 = vmatpush.msra.mxu0 0.0
      %675 = vmatpush.msra.mxu0 0.0
      %676 = vmatpush.msra.mxu0 0.0
      %677 = vmatpush.msra.mxu0 0.0
      %678 = vmatpush.msra.mxu0 0.0
      %679 = vmatpush.msra.mxu0 %v526
      %680 = vmatpush.msra.mxu0 %v524
      %681 = vmatpush.msra.mxu0 %v522
      %682 = vmatpush.msra.mxu0 %v520
      %683 = vmatpush.msra.mxu0 %v518
      %684 = vmatpush.msra.mxu0 %v516
      %685 = vmatpush.msra.mxu0 %v514
      %686 = vmatpush.msra.mxu0 %v512
      %687 = vmatmul.f32.gmra.mxu0 %v669
      %v688 = vpop.f32.mrf.mxu0
      %v689 = vadd.f32 0.0, %v688
      %690 = vdwg.mxu0
      %v691 = vmax.f32 %v689, 1e-30
      %v692 = vlog2.pop %v691
      %v693 = vmul.f32 %v692, 0.6931472
      %v694 = vmul.f32 %v693, 0.8333333
      %v695 = vsub.f32 -4.0433583, %v694
      %v696 = vmul.f32 %v695, 1.442695
      %v697 = vpow.pop %v696
    $region22: #{tpu_custom_call.1} parent=1 // loop_footer
      %s580 = sadd.s32 1, %s576
    $region23: #{tpu_custom_call.1} parent=1 // loop_footer_branch
      %575 = sbr.rel target = $region19
    $region24: #{tpu_custom_call.1} parent=1 // loop_exit
      _
    %v698 = vlaneseq
    %v699 = vshrl.u32 %v698, 7
    %v700 = vadd.s32 %v699, 8
    %v701 = vadd.s32 %v699, 16
    %v702 = vadd.s32 %v699, 24
    %v703 = vadd.s32 %v699, 32
    %v704 = vadd.s32 %v699, 40
    %v705 = vadd.s32 %v699, 48
    %v706 = vadd.s32 %v699, 56
    %v707 = vadd.s32 %v699, 64
    %v708 = vadd.s32 %v699, 72
    %v709 = vadd.s32 %v699, 80
    %v710 = vadd.s32 %v699, 88
    %v711 = vadd.s32 %v699, 96
    %v712 = vadd.s32 %v699, 104
    %v713 = vadd.s32 %v699, 112
    %v714 = vadd.s32 %v699, 120
    %v715 = vlaneseq
    %v716 = vand.u32 %v715, 127
    %vm717 = vcmp.eq.s32.totalorder %v699, %v716
    %vm718 = vcmp.eq.s32.totalorder %v700, %v716
    %vm719 = vcmp.eq.s32.totalorder %v701, %v716
    %vm720 = vcmp.eq.s32.totalorder %v702, %v716
    %vm721 = vcmp.eq.s32.totalorder %v703, %v716
    %vm722 = vcmp.eq.s32.totalorder %v704, %v716
    %vm723 = vcmp.eq.s32.totalorder %v705, %v716
    %vm724 = vcmp.eq.s32.totalorder %v706, %v716
    %vm725 = vcmp.eq.s32.totalorder %v707, %v716
    %vm726 = vcmp.eq.s32.totalorder %v708, %v716
    %vm727 = vcmp.eq.s32.totalorder %v709, %v716
    %vm728 = vcmp.eq.s32.totalorder %v710, %v716
    %vm729 = vcmp.eq.s32.totalorder %v711, %v716
    %vm730 = vcmp.eq.s32.totalorder %v712, %v716
    %vm731 = vcmp.eq.s32.totalorder %v713, %v716
    %vm732 = vcmp.eq.s32.totalorder %v714, %v716
    %v733 = vperm.slane %v582, 0
    %v734 = vsel %vm717, %v733, 0.0
    %v735 = vsel %vm718, %v733, 0.0
    %v736 = vsel %vm719, %v733, 0.0
    %v737 = vsel %vm720, %v733, 0.0
    %v738 = vsel %vm721, %v733, 0.0
    %v739 = vsel %vm722, %v733, 0.0
    %v740 = vsel %vm723, %v733, 0.0
    %v741 = vsel %vm724, %v733, 0.0
    %v742 = vsel %vm725, %v733, 0.0
    %v743 = vsel %vm726, %v733, 0.0
    %v744 = vsel %vm727, %v733, 0.0
    %v745 = vsel %vm728, %v733, 0.0
    %v746 = vsel %vm729, %v733, 0.0
    %v747 = vsel %vm730, %v733, 0.0
    %v748 = vsel %vm731, %v733, 0.0
    %v749 = vsel %vm732, %v733, 0.0
    %v750 = vperm.slane %v581, 0
    %v751 = vmul.f32 %v544, %v750
    %v752 = vmul.f32 %v546, %v750
    %v753 = vmul.f32 %v548, %v750
    %v754 = vmul.f32 %v550, %v750
    %v755 = vmul.f32 %v552, %v750
    %v756 = vmul.f32 %v554, %v750
    %v757 = vmul.f32 %v556, %v750
    %v758 = vmul.f32 %v558, %v750
    %v759 = vmul.f32 %v560, %v750
    %v760 = vmul.f32 %v562, %v750
    %v761 = vmul.f32 %v564, %v750
    %v762 = vmul.f32 %v566, %v750
    %v763 = vmul.f32 %v568, %v750
    %v764 = vmul.f32 %v570, %v750
    %v765 = vmul.f32 %v572, %v750
    %v766 = vmul.f32 %v574, %v750
    %767 = vmatpush.msra.mxu0 %v766
    %768 = vmatpush.msra.mxu0 %v765
    %769 = vmatpush.msra.mxu0 %v764
    %770 = vmatpush.msra.mxu0 %v763
    %771 = vmatpush.msra.mxu0 %v762
    %772 = vmatpush.msra.mxu0 %v761
    %773 = vmatpush.msra.mxu0 %v760
    %774 = vmatpush.msra.mxu0 %v759
    %775 = vmatpush.msra.mxu0 %v758
    %776 = vmatpush.msra.mxu0 %v757
    %777 = vmatpush.msra.mxu0 %v756
    %778 = vmatpush.msra.mxu0 %v755
    %779 = vmatpush.msra.mxu0 %v754
    %780 = vmatpush.msra.mxu0 %v753
    %781 = vmatpush.msra.mxu0 %v752
    %782 = vmatpush.msra.mxu0 %v751
    %783 = vmatmul.f32.gmra.mxu0 %v734
    %v784 = vpop.f32.mrf.mxu0
    %v785 = vadd.f32 0.0, %v784
    %786 = vmatmul.f32.gmra.mxu0 %v735
    %v787 = vpop.f32.mrf.mxu0
    %v788 = vadd.f32 0.0, %v787
    %789 = vmatmul.f32.gmra.mxu0 %v736
    %v790 = vpop.f32.mrf.mxu0
    %v791 = vadd.f32 0.0, %v790
    %792 = vmatmul.f32.gmra.mxu0 %v737
    %v793 = vpop.f32.mrf.mxu0
    %v794 = vadd.f32 0.0, %v793
    %795 = vmatmul.f32.gmra.mxu0 %v738
    %v796 = vpop.f32.mrf.mxu0
    %v797 = vadd.f32 0.0, %v796
    %798 = vmatmul.f32.gmra.mxu0 %v739
    %v799 = vpop.f32.mrf.mxu0
    %v800 = vadd.f32 0.0, %v799
    %801 = vmatmul.f32.gmra.mxu0 %v740
    %v802 = vpop.f32.mrf.mxu0
    %v803 = vadd.f32 0.0, %v802
    %804 = vmatmul.f32.gmra.mxu0 %v741
    %v805 = vpop.f32.mrf.mxu0
    %v806 = vadd.f32 0.0, %v805
    %807 = vmatmul.f32.gmra.mxu0 %v742
    %v808 = vpop.f32.mrf.mxu0
    %v809 = vadd.f32 0.0, %v808
    %810 = vmatmul.f32.gmra.mxu0 %v743
    %v811 = vpop.f32.mrf.mxu0
    %v812 = vadd.f32 0.0, %v811
    %813 = vmatmul.f32.gmra.mxu0 %v744
    %v814 = vpop.f32.mrf.mxu0
    %v815 = vadd.f32 0.0, %v814
    %816 = vmatmul.f32.gmra.mxu0 %v745
    %v817 = vpop.f32.mrf.mxu0
    %v818 = vadd.f32 0.0, %v817
    %819 = vmatmul.f32.gmra.mxu0 %v746
    %v820 = vpop.f32.mrf.mxu0
    %v821 = vadd.f32 0.0, %v820
    %822 = vmatmul.f32.gmra.mxu0 %v747
    %v823 = vpop.f32.mrf.mxu0
    %v824 = vadd.f32 0.0, %v823
    %825 = vmatmul.f32.gmra.mxu0 %v748
    %v826 = vpop.f32.mrf.mxu0
    %v827 = vadd.f32 0.0, %v826
    %828 = vmatmul.f32.gmra.mxu0 %v749
    %v829 = vpop.f32.mrf.mxu0
    %v830 = vadd.f32 0.0, %v829
    %831 = vdwg.mxu0
    %vm832 = vcmask 523264
    %833 = vst.msk [vmem:[%s2] sm:$0xff] %vm832, %v785
    %834 = vst.msk [vmem:[%s2 + $0x8] sm:$0xff] %vm832, %v788
    %835 = vst.msk [vmem:[%s2 + $0x10] sm:$0xff] %vm832, %v791
    %836 = vst.msk [vmem:[%s2 + $0x18] sm:$0xff] %vm832, %v794
    %837 = vst.msk [vmem:[%s2 + $0x20] sm:$0xff] %vm832, %v797
    %838 = vst.msk [vmem:[%s2 + $0x28] sm:$0xff] %vm832, %v800
    %839 = vst.msk [vmem:[%s2 + $0x30] sm:$0xff] %vm832, %v803
    %840 = vst.msk [vmem:[%s2 + $0x38] sm:$0xff] %vm832, %v806
    %841 = vst.msk [vmem:[%s2 + $0x40] sm:$0xff] %vm832, %v809
    %842 = vst.msk [vmem:[%s2 + $0x48] sm:$0xff] %vm832, %v812
    %843 = vst.msk [vmem:[%s2 + $0x50] sm:$0xff] %vm832, %v815
    %844 = vst.msk [vmem:[%s2 + $0x58] sm:$0xff] %vm832, %v818
    %845 = vst.msk [vmem:[%s2 + $0x60] sm:$0xff] %vm832, %v821
    %846 = vst.msk [vmem:[%s2 + $0x68] sm:$0xff] %vm832, %v824
    %847 = vst.msk [vmem:[%s2 + $0x70] sm:$0xff] %vm832, %v827
    %848 = vst.msk [vmem:[%s2 + $0x78] sm:$0xff] %vm832, %v830
    %v849 = vmul.f32 %v442, %v785
    %v850 = vmul.f32 %v443, %v788
    %v851 = vmul.f32 %v444, %v791
    %v852 = vmul.f32 %v445, %v794
    %v853 = vmul.f32 %v446, %v797
    %v854 = vmul.f32 %v447, %v800
    %v855 = vmul.f32 %v448, %v803
    %v856 = vmul.f32 %v449, %v806
    %v857 = vmul.f32 %v450, %v809
    %v858 = vmul.f32 %v451, %v812
    %v859 = vmul.f32 %v452, %v815
    %v860 = vmul.f32 %v453, %v818
    %v861 = vmul.f32 %v454, %v821
    %v862 = vmul.f32 %v455, %v824
    %v863 = vmul.f32 %v456, %v827
    %v864 = vmul.f32 %v457, %v830
    %v865 = vsel %vm832, %v849, 0.0
    %866 = vadd.xlane.f32.xlu0 %v865
    %v867 = vpop.xlane.xlu0 %866
    %v868 = vsel %vm832, %v850, 0.0
    %869 = vadd.xlane.f32.xlu0 %v868
    %v870 = vpop.xlane.xlu0 %869
    %v871 = vsel %vm832, %v851, 0.0
    %872 = vadd.xlane.f32.xlu0 %v871
    %v873 = vpop.xlane.xlu0 %872
    %v874 = vsel %vm832, %v852, 0.0
    %875 = vadd.xlane.f32.xlu0 %v874
    %v876 = vpop.xlane.xlu0 %875
    %v877 = vsel %vm832, %v853, 0.0
    %878 = vadd.xlane.f32.xlu0 %v877
    %v879 = vpop.xlane.xlu0 %878
    %v880 = vsel %vm832, %v854, 0.0
    %881 = vadd.xlane.f32.xlu0 %v880
    %v882 = vpop.xlane.xlu0 %881
    %v883 = vsel %vm832, %v855, 0.0
    %884 = vadd.xlane.f32.xlu0 %v883
    %v885 = vpop.xlane.xlu0 %884
    %v886 = vsel %vm832, %v856, 0.0
    %887 = vadd.xlane.f32.xlu0 %v886
    %v888 = vpop.xlane.xlu0 %887
    %v889 = vsel %vm832, %v857, 0.0
    %890 = vadd.xlane.f32.xlu0 %v889
    %v891 = vpop.xlane.xlu0 %890
    %v892 = vsel %vm832, %v858, 0.0
    %893 = vadd.xlane.f32.xlu0 %v892
    %v894 = vpop.xlane.xlu0 %893
    %v895 = vsel %vm832, %v859, 0.0
    %896 = vadd.xlane.f32.xlu0 %v895
    %v897 = vpop.xlane.xlu0 %896
    %v898 = vsel %vm832, %v860, 0.0
    %899 = vadd.xlane.f32.xlu0 %v898
    %v900 = vpop.xlane.xlu0 %899
    %v901 = vsel %vm832, %v861, 0.0
    %902 = vadd.xlane.f32.xlu0 %v901
    %v903 = vpop.xlane.xlu0 %902
    %v904 = vsel %vm832, %v862, 0.0
    %905 = vadd.xlane.f32.xlu0 %v904
    %v906 = vpop.xlane.xlu0 %905
    %v907 = vsel %vm832, %v863, 0.0
    %908 = vadd.xlane.f32.xlu0 %v907
    %v909 = vpop.xlane.xlu0 %908
    %v910 = vsel %vm832, %v864, 0.0
    %911 = vadd.xlane.f32.xlu0 %v910
    %v912 = vpop.xlane.xlu0 %911
    %v913 = vadd.f32 %v867, %v870
    %v914 = vadd.f32 %v913, %v873
    %v915 = vadd.f32 %v914, %v876
    %v916 = vadd.f32 %v915, %v879
    %v917 = vadd.f32 %v916, %v882
    %v918 = vadd.f32 %v917, %v885
    %v919 = vadd.f32 %v918, %v888
    %v920 = vadd.f32 %v919, %v891
    %v921 = vadd.f32 %v920, %v894
    %v922 = vadd.f32 %v921, %v897
    %v923 = vadd.f32 %v922, %v900
    %v924 = vadd.f32 %v923, %v903
    %v925 = vadd.f32 %v924, %v906
    %v926 = vadd.f32 %v925, %v909
    %v927 = vadd.f32 %v926, %v912
    %v928 = vrot.slane %v927, 4
    %v929 = vadd.f32 %v927, %v928
    %v930 = vrot.slane %v929, 2
    %v931 = vadd.f32 %v929, %v930
    %v932 = vrot.slane %v931, 1
    %v933 = vadd.f32 %v931, %v932
    %vm934 = vcmask 0
    %935 = vst.msk [vmem:[#allocation7] sm:$0x1] %vm934, %v933
    // Predicated region
    $region25: #{tpu_custom_call.1} parent=1 // pred_check
      _
    $region26: #{tpu_custom_call.1} parent=1 // pred_check_branch
      %937 = sbr.rel (0) target = $region28
    $region27: #{tpu_custom_call.1} parent=1 // pred_region
      _
    $region28: #{tpu_custom_call.1} parent=1 // pred_fallthru
      _
    // Predicated region
    $region29: #{tpu_custom_call.1} parent=1 // pred_check
      _
    $region30: #{tpu_custom_call.1} parent=1 // pred_check_branch
      %939 = sbr.rel (0) target = $region32
    $region31: #{tpu_custom_call.1} parent=1 // pred_region
      %941 = vsyncadd [#allocation4], 0
      %s943 = sshll.u32 [#allocation7], 4
      %s944 = int_to_ptr.vmem [resolvable:$true] %s943
      %s945 = sshll.u32 %s3, 4
      %s946 = int_to_ptr.hbm [resolvable:$true] %s945
      %948 = dma.vmem_to_hbm [thread:$0]  %s944, 16, %s946, [#allocation4]
    $region32: #{tpu_custom_call.1} parent=1 // pred_fallthru
      _
    // Predicated region
    $region33: #{tpu_custom_call.1} parent=1 // pred_check
      _
    $region34: #{tpu_custom_call.1} parent=1 // pred_check_branch
      %950 = sbr.rel (0) target = $region36
    $region35: #{tpu_custom_call.1} parent=1 // pred_region
      _
    $region36: #{tpu_custom_call.1} parent=1 // pred_fallthru
      _
    // Predicated region
    $region37: #{tpu_custom_call.1} parent=1 // pred_check
      _
    $region38: #{tpu_custom_call.1} parent=1 // pred_check_branch
      %952 = sbr.rel (0) target = $region40
    $region39: #{tpu_custom_call.1} parent=1 // pred_region
      %954 = dma.done [#allocation4], 16
    $region40: #{tpu_custom_call.1} parent=1 // pred_fallthru
      _
    %955 = vsyncpa [#allocation3], 1
    %956 = vsyncpa [#allocation6], 1
    %957 = vsyncpa [#allocation4], 1

</llo_original>
